<compile_context>
chip_gen: v5e
topology: v5e:2x2
jax: 0.10.0
libtpu: 0.0.40
codegen_flags: <defaults>
</compile_context>

<pallas_src>
import math

import jax
import jax.numpy as jnp
import numpy as np
from jax import lax
from jax.experimental import pallas as pl
from jax.experimental.pallas import tpu as pltpu


def _pick_head_group(H, D, lane_cap=512):
    """Largest head-group size GH (divisor of H) such that the (tile, GH*D) block is
    legal (GH == H or GH*D % 128 == 0) and GH*D <= lane_cap lanes."""
    valid = [g for g in range(1, H + 1)
             if H % g == 0 and (g == H or (g * D) % 128 == 0)]
    within = [g for g in valid if g * D <= lane_cap]
    return max(within) if within else min(valid)


def _pick_tile(dim, target, multiple):
    """Largest divisor of `dim` that is <= target and a multiple of `multiple`;
    falls back to the full dim (a full-extent block is always legal)."""
    t = min(target, dim)
    while t >= multiple:
        if dim % t == 0 and t % multiple == 0:
            return t
        t -= 1
    return dim


def _make_kernel(GH, D, masked):
    """Build the flash-attention kernel for a head group of GH heads of dim D."""
    scale = 1.0 / math.sqrt(D)

    def kernel(q_ref, k_ref, v_ref, *rest):
        if masked:
            kvb_ref, qm_ref, o_ref, qs_ref, m_ref, l_ref, acc_ref = rest
        else:
            o_ref, qs_ref, m_ref, l_ref, acc_ref = rest
            qm_ref = None
            kvb_ref = None

        j = pl.program_id(3)

        @pl.when(j == 0)
        def _init():
            # Hoist softmax-temperature scaling of q out of the kv loop: computed
            # once per q-tile, reused for every kv tile, kept in the native dtype
            # so the MXU sees bf16/fp8 operands unchanged.
            qs_ref[...] = (q_ref[...] * scale).astype(qs_ref.dtype)
            m_ref[...] = jnp.full(m_ref.shape, -jnp.inf, m_ref.dtype)
            l_ref[...] = jnp.zeros(l_ref.shape, l_ref.dtype)
            acc_ref[...] = jnp.zeros(acc_ref.shape, acc_ref.dtype)

        if masked:
            kvb = kvb_ref[...]                        # (1, TK) additive key bias

        # Static (fully unrolled) loop over the GH heads of this head group.
        for g in range(GH):
            hd = slice(g * D, (g + 1) * D)
            col = slice(g, g + 1)

            q_g = qs_ref[:, hd]                       # (TQ, D), already scaled
            k_g = k_ref[:, hd]                        # (TK, D)
            v_g = v_ref[:, hd]                        # (TK, D)

            # q @ k^T on the MXU, contraction over D, f32 accumulation.
            s = lax.dot_general(q_g, k_g, (((1,), (1,)), ((), ())),
                                preferred_element_type=jnp.float32)
            if masked:
                s = s + kvb                           # masked keys pushed to -1e30

            # Online softmax update for head g.
            m_prev = m_ref[:, col]
            m_new = jnp.maximum(m_prev, jnp.max(s, axis=-1, keepdims=True))
            alpha = jnp.exp(m_prev - m_new)           # rescale of previous partials
            p = jnp.exp(s - m_new)
            l_ref[:, col] = alpha * l_ref[:, col] + jnp.sum(p, axis=-1, keepdims=True)
            acc_ref[:, hd] = alpha * acc_ref[:, hd] + jnp.dot(
                p.astype(v_g.dtype), v_g, preferred_element_type=jnp.float32)
            m_ref[:, col] = m_new

        @pl.when(j == pl.num_programs(3) - 1)
        def _finalize():
            inv_l = pl.reciprocal(l_ref[...], approx=True)   # (TQ, GH) on the EUP
            if masked:
                inv_l = inv_l * qm_ref[...]                   # fold query-row scale once
            for g in range(GH):
                hd = slice(g * D, (g + 1) * D)
                o_ref[:, hd] = (acc_ref[:, hd] * inv_l[:, g:g + 1]).astype(o_ref.dtype)

    return kernel


def full_attention(queries, keys, values, q_mask=None, kv_mask=None,
                   *, block_q=256, block_k=256):
    """queries: [N, L, H, D], keys/values: [N, S, H, D],
    q_mask: [N, L] (bool) or None, kv_mask: [N, S] (bool) or None.
    Returns [N, L, H, D]."""
    N, L, H, D = queries.shape
    S = keys.shape[1]
    dtype = queries.dtype

    masked = kv_mask is not None                      # matches PyTorch: masking only if kv_mask

    GH = _pick_head_group(H, D)                       # heads per grid step
    HG = H // GH
    HD = GH * D                                       # lanes per block (>=128 when possible)

    tq = _pick_tile(L, block_q, 8)
    # In the masked path the kv-bias is tiled along its last dim -> TK must be a
    # multiple of 128 (or the full S); the K/V second-to-last dim only needs 8.
    tk = _pick_tile(S, block_k, 128 if masked else 8)

    # Flatten head/feature dims (free: H and D are contiguous) so Q/K/V/O blocks are
    # lane-dense slabs and HBM bursts are >= GH*D contiguous elements per row.
    q3 = queries.reshape(N, L, H * D)
    k3 = keys.reshape(N, S, H * D)
    v3 = values.reshape(N, S, H * D)

    grid = (N, HG, L // tq, S // tk)

    q_spec = pl.BlockSpec((pl.Squeezed(), tq, HD), lambda n, h, i, j: (n, i, h))
    kv_spec = pl.BlockSpec((pl.Squeezed(), tk, HD), lambda n, h, i, j: (n, j, h))
    out_spec = pl.BlockSpec((pl.Squeezed(), tq, HD), lambda n, h, i, j: (n, i, h))

    in_specs = [q_spec, kv_spec, kv_spec]
    inputs = [q3, k3, v3]

    if masked:
        # Additive key bias: 0 for valid keys, -1e30 for masked keys.
        kv_bias = ((kv_mask.astype(jnp.float32) - 1.0) * 1e30).reshape(N, 1, S)
        # Query-row validity applied as an output row scale (masked rows -> 0,
        # instead of the reference's NaN rows).
        if q_mask is None:
            q_scale = jnp.ones((N, L, 1), jnp.float32)
        else:
            q_scale = q_mask.astype(jnp.float32).reshape(N, L, 1)
        in_specs += [
            pl.BlockSpec((pl.Squeezed(), 1, tk), lambda n, h, i, j: (n, 0, j)),
            pl.BlockSpec((pl.Squeezed(), tq, 1), lambda n, h, i, j: (n, i, 0)),
        ]
        inputs += [kv_bias, q_scale]

    kernel = _make_kernel(GH, D, masked)

    out = pl.pallas_call(
        kernel,
        out_shape=jax.ShapeDtypeStruct((N, L, H * D), dtype),
        grid_spec=pltpu.PrefetchScalarGridSpec(
            num_scalar_prefetch=0,
            grid=grid,
            in_specs=in_specs,
            out_specs=out_spec,
            scratch_shapes=[
                pltpu.VMEM((tq, HD), dtype),          # scaled q (hoisted out of kv loop)
                pltpu.VMEM((tq, GH), jnp.float32),    # running max, one column per head
                pltpu.VMEM((tq, GH), jnp.float32),    # running sum, one column per head
                pltpu.VMEM((tq, HD), jnp.float32),    # running weighted V
            ],
        ),
        compiler_params=pltpu.CompilerParams(
            # kv-tile axis carries the online-softmax reduction -> "arbitrary";
            # N / head-group / L-tile axes are independent -> "parallel".
            dimension_semantics=("parallel", "parallel", "parallel", "arbitrary")),
    )(*inputs)

    return out.reshape(N, L, H, D)


def _reference(queries, keys, values, q_mask=None, kv_mask=None):
    q = queries.astype(jnp.float32)
    k = keys.astype(jnp.float32)
    v = values.astype(jnp.float32)
    qk = jnp.einsum('nlhd,nshd->nlsh', q, k)
    if kv_mask is not None:
        qm = q_mask if q_mask is not None else jnp.ones(queries.shape[:2], bool)
        mask = qm[:, :, None, None] & kv_mask[:, None, :, None]
        qk = jnp.where(mask, qk, -jnp.inf)
    scale = 1.0 / queries.shape[3] ** 0.5
    a = jax.nn.softmax(scale * qk, axis=2)
    return jnp.einsum('nlsh,nshd->nlhd', a, v)


if __name__ == "__main__":
    # ---- Test 1: small f32 case (D=32 -> GH=4, single tile), masked + unmasked ----
    N, L, S, H, D = 2, 8, 8, 4, 32
    key = jax.random.PRNGKey(0)
    kq, kk, kv_ = jax.random.split(key, 3)
    queries = jax.random.normal(kq, (N, L, H, D), dtype=jnp.float32)
    keys = jax.random.normal(kk, (N, S, H, D), dtype=jnp.float32)
    values = jax.random.normal(kv_, (N, S, H, D), dtype=jnp.float32)

    q_mask = jnp.ones((N, L), dtype=bool)
    kv_mask = jnp.concatenate(
        [jnp.ones((N, S - 2), dtype=bool), jnp.zeros((N, 2), dtype=bool)], axis=1)

    out_nomask = jax.block_until_ready(full_attention(queries, keys, values))
    out_masked = jax.block_until_ready(
        full_attention(queries, keys, values, q_mask, kv_mask))

    ref_nomask = _reference(queries, keys, values)
    ref_masked = _reference(queries, keys, values, q_mask, kv_mask)

    # Tolerance accounts for the approximate (EUP) reciprocal in the row normalization.
    assert np.allclose(np.asarray(out_nomask), np.asarray(ref_nomask),
                       atol=5e-3, rtol=5e-3), "no-mask output mismatch"
    assert np.allclose(np.asarray(out_masked), np.asarray(ref_masked),
                       atol=5e-3, rtol=5e-3), "masked output mismatch"

    # ---- Test 2: bf16, multi-tile (grid over q/kv tiles), D=64 -> GH=2, masked ----
    N2, L2, S2, H2, D2 = 1, 512, 512, 2, 64
    k2 = jax.random.split(jax.random.PRNGKey(1), 3)
    q2 = jax.random.normal(k2[0], (N2, L2, H2, D2), dtype=jnp.bfloat16)
    k2_ = jax.random.normal(k2[1], (N2, S2, H2, D2), dtype=jnp.bfloat16)
    v2 = jax.random.normal(k2[2], (N2, S2, H2, D2), dtype=jnp.bfloat16)
    qm2 = jnp.ones((N2, L2), dtype=bool)
    km2 = jnp.arange(S2)[None, :] < (S2 - 64)

    out2 = jax.block_until_ready(full_attention(q2, k2_, v2, qm2, km2))
    ref2 = _reference(q2, k2_, v2, qm2, km2)
    assert np.allclose(np.asarray(out2, dtype=np.float32), np.asarray(ref2),
                       atol=4e-2, rtol=4e-2), "bf16 multi-tile output mismatch"

    print("KERNEL_OK")
</pallas_src>

<mosaic_0001>
module attributes {stable_mosaic.version = 11 : i64} {
  func.func @kernel(%arg0: i32, %arg1: i32, %arg2: i32, %arg3: i32, %arg4: memref<1x8x128xf32, #tpu.memory_space<vmem>>, %arg5: memref<1x8x128xf32, #tpu.memory_space<vmem>>, %arg6: memref<1x8x128xf32, #tpu.memory_space<vmem>>, %arg7: memref<1x8x128xf32, #tpu.memory_space<vmem>>, %arg8: memref<8x128xf32, #tpu.memory_space<vmem>>, %arg9: memref<8x4xf32, #tpu.memory_space<vmem>>, %arg10: memref<8x4xf32, #tpu.memory_space<vmem>>, %arg11: memref<8x128xf32, #tpu.memory_space<vmem>>) attributes {dimension_semantics = [#tpu.dimension_semantics<parallel>, #tpu.dimension_semantics<parallel>, #tpu.dimension_semantics<parallel>, #tpu.dimension_semantics<arbitrary>], iteration_bounds = array<i64: 2, 1, 1, 1>, scalar_prefetch = 0 : i64, scratch_operands = 4 : i64, tpu.core_type = #tpu.core_type<tc>, window_params = [{transform_indices = @transform_0, window_bounds = array<i64: 1, 8, 128>}, {transform_indices = @transform_1, window_bounds = array<i64: 1, 8, 128>}, {transform_indices = @transform_2, window_bounds = array<i64: 1, 8, 128>}, {transform_indices = @transform_3, window_bounds = array<i64: 1, 8, 128>}]} {
    %c0_i32 = arith.constant 0 : i32
    %0 = arith.cmpi eq, %arg3, %c0_i32 : i32
    %1 = arith.extui %0 : i1 to i32
    %c0_i32_0 = arith.constant 0 : i32
    %2 = arith.cmpi ne, %1, %c0_i32_0 : i32
    scf.if %2 {
      %c0_91 = arith.constant 0 : index
      %c0_92 = arith.constant 0 : index
      %c0_93 = arith.constant 0 : index
      %118 = vector.load %arg4[%c0_91, %c0_92, %c0_93] : memref<1x8x128xf32, #tpu.memory_space<vmem>>, vector<1x8x128xf32>
      %119 = vector.shape_cast %118 : vector<1x8x128xf32> to vector<8x128xf32>
      %cst_94 = arith.constant 0.176776692 : f32
      %120 = vector.broadcast %cst_94 : f32 to vector<8x128xf32>
      %121 = arith.mulf %119, %120 : vector<8x128xf32>
      %c0_95 = arith.constant 0 : index
      %c0_96 = arith.constant 0 : index
      %122 = vector.load %arg8[%c0_95, %c0_96] : memref<8x128xf32, #tpu.memory_space<vmem>>, vector<8x128xf32>
      tpu.vector_store %arg8[%c0_95, %c0_96], %121 {strides = array<i32>} : memref<8x128xf32, #tpu.memory_space<vmem>>, vector<8x128xf32>,
      %cst_97 = arith.constant 0xFF800000 : f32
      %123 = vector.broadcast %cst_97 : f32 to vector<8x4xf32>
      %c0_98 = arith.constant 0 : index
      %c0_99 = arith.constant 0 : index
      %124 = vector.load %arg9[%c0_98, %c0_99] : memref<8x4xf32, #tpu.memory_space<vmem>>, vector<8x4xf32>
      tpu.vector_store %arg9[%c0_98, %c0_99], %123 {strides = array<i32>} : memref<8x4xf32, #tpu.memory_space<vmem>>, vector<8x4xf32>,
      %cst_100 = arith.constant 0.000000e+00 : f32
      %125 = vector.broadcast %cst_100 : f32 to vector<8x4xf32>
      %c0_101 = arith.constant 0 : index
      %c0_102 = arith.constant 0 : index
      %126 = vector.load %arg10[%c0_101, %c0_102] : memref<8x4xf32, #tpu.memory_space<vmem>>, vector<8x4xf32>
      tpu.vector_store %arg10[%c0_101, %c0_102], %125 {strides = array<i32>} : memref<8x4xf32, #tpu.memory_space<vmem>>, vector<8x4xf32>,
      %cst_103 = arith.constant 0.000000e+00 : f32
      %127 = vector.broadcast %cst_103 : f32 to vector<8x128xf32>
      %c0_104 = arith.constant 0 : index
      %c0_105 = arith.constant 0 : index
      %128 = vector.load %arg11[%c0_104, %c0_105] : memref<8x128xf32, #tpu.memory_space<vmem>>, vector<8x128xf32>
      tpu.vector_store %arg11[%c0_104, %c0_105], %127 {strides = array<i32>} : memref<8x128xf32, #tpu.memory_space<vmem>>, vector<8x128xf32>,
    } else {
    }
    %c0 = arith.constant 0 : index
    %c0_1 = arith.constant 0 : index
    %3 = vector.load %arg8[%c0, %c0_1] : memref<8x128xf32, #tpu.memory_space<vmem>>, vector<8x32xf32>
    %c0_2 = arith.constant 0 : index
    %c0_3 = arith.constant 0 : index
    %c0_4 = arith.constant 0 : index
    %4 = vector.load %arg5[%c0_2, %c0_3, %c0_4] : memref<1x8x128xf32, #tpu.memory_space<vmem>>, vector<1x8x32xf32>
    %5 = vector.shape_cast %4 : vector<1x8x32xf32> to vector<8x32xf32>
    %c0_5 = arith.constant 0 : index
    %c0_6 = arith.constant 0 : index
    %c0_7 = arith.constant 0 : index
    %6 = vector.load %arg6[%c0_5, %c0_6, %c0_7] : memref<1x8x128xf32, #tpu.memory_space<vmem>>, vector<1x8x32xf32>
    %7 = vector.shape_cast %6 : vector<1x8x32xf32> to vector<8x32xf32>
    %cst = arith.constant dense<0.000000e+00> : vector<8x8xf32>
    %8 = tpu.matmul %3, %5, %cst {dimension_numbers = #tpu.dot_dimension_numbers<[1], [1], [0], [0], [0, 0, 1, 0], [], []>} : vector<8x32xf32>, vector<8x32xf32>, vector<8x8xf32> -> vector<8x8xf32>
    %c0_8 = arith.constant 0 : index
    %c0_9 = arith.constant 0 : index
    %9 = vector.load %arg9[%c0_8, %c0_9] : memref<8x4xf32, #tpu.memory_space<vmem>>, vector<8x1xf32>
    %cst_10 = arith.constant dense<0xFF800000> : vector<8xf32>
    %10 = vector.multi_reduction <maximumf>, %8, %cst_10 [1] : vector<8x8xf32> to vector<8xf32>
    %11 = vector.shape_cast %10 : vector<8xf32> to vector<8x1xf32>
    %12 = arith.maximumf %9, %11 : vector<8x1xf32>
    %13 = arith.subf %9, %12 : vector<8x1xf32>
    %14 = math.exp %13 : vector<8x1xf32>
    %15 = vector.broadcast %12 : vector<8x1xf32> to vector<8x8xf32>
    %16 = arith.subf %8, %15 : vector<8x8xf32>
    %17 = math.exp %16 : vector<8x8xf32>
    %c0_11 = arith.constant 0 : index
    %c0_12 = arith.constant 0 : index
    %18 = vector.load %arg10[%c0_11, %c0_12] : memref<8x4xf32, #tpu.memory_space<vmem>>, vector<8x1xf32>
    %19 = arith.mulf %14, %18 : vector<8x1xf32>
    %cst_13 = arith.constant dense<0.000000e+00> : vector<8xf32>
    %20 = vector.multi_reduction <add>, %17, %cst_13 [1] : vector<8x8xf32> to vector<8xf32>
    %21 = vector.shape_cast %20 : vector<8xf32> to vector<8x1xf32>
    %22 = arith.addf %19, %21 : vector<8x1xf32>
    %c0_14 = arith.constant 0 : index
    %c0_15 = arith.constant 0 : index
    %23 = vector.load %arg10[%c0_14, %c0_15] : memref<8x4xf32, #tpu.memory_space<vmem>>, vector<8x1xf32>
    tpu.vector_store %arg10[%c0_14, %c0_15], %22 {strides = array<i32>} : memref<8x4xf32, #tpu.memory_space<vmem>>, vector<8x1xf32>,
    %c0_16 = arith.constant 0 : index
    %c0_17 = arith.constant 0 : index
    %24 = vector.load %arg11[%c0_16, %c0_17] : memref<8x128xf32, #tpu.memory_space<vmem>>, vector<8x32xf32>
    %25 = vector.broadcast %14 : vector<8x1xf32> to vector<8x32xf32>
    %26 = arith.mulf %25, %24 : vector<8x32xf32>
    %cst_18 = arith.constant dense<0.000000e+00> : vector<8x32xf32>
    %27 = tpu.matmul %17, %7, %cst_18 {dimension_numbers = #tpu.dot_dimension_numbers<[1], [0], [0], [1], [0, 0, 1, 1], [], []>} : vector<8x8xf32>, vector<8x32xf32>, vector<8x32xf32> -> vector<8x32xf32>
    %28 = arith.addf %26, %27 : vector<8x32xf32>
    %c0_19 = arith.constant 0 : index
    %c0_20 = arith.constant 0 : index
    %29 = vector.load %arg11[%c0_19, %c0_20] : memref<8x128xf32, #tpu.memory_space<vmem>>, vector<8x32xf32>
    tpu.vector_store %arg11[%c0_19, %c0_20], %28 {strides = array<i32>} : memref<8x128xf32, #tpu.memory_space<vmem>>, vector<8x32xf32>,
    %c0_21 = arith.constant 0 : index
    %c0_22 = arith.constant 0 : index
    %30 = vector.load %arg9[%c0_21, %c0_22] : memref<8x4xf32, #tpu.memory_space<vmem>>, vector<8x1xf32>
    tpu.vector_store %arg9[%c0_21, %c0_22], %12 {strides = array<i32>} : memref<8x4xf32, #tpu.memory_space<vmem>>, vector<8x1xf32>,
    %c0_23 = arith.constant 0 : index
    %c32 = arith.constant 32 : index
    %31 = vector.load %arg8[%c0_23, %c32] : memref<8x128xf32, #tpu.memory_space<vmem>>, vector<8x32xf32>
    %c0_24 = arith.constant 0 : index
    %c0_25 = arith.constant 0 : index
    %c32_26 = arith.constant 32 : index
    %32 = vector.load %arg5[%c0_24, %c0_25, %c32_26] : memref<1x8x128xf32, #tpu.memory_space<vmem>>, vector<1x8x32xf32>
    %33 = vector.shape_cast %32 : vector<1x8x32xf32> to vector<8x32xf32>
    %c0_27 = arith.constant 0 : index
    %c0_28 = arith.constant 0 : index
    %c32_29 = arith.constant 32 : index
    %34 = vector.load %arg6[%c0_27, %c0_28, %c32_29] : memref<1x8x128xf32, #tpu.memory_space<vmem>>, vector<1x8x32xf32>
    %35 = vector.shape_cast %34 : vector<1x8x32xf32> to vector<8x32xf32>
    %cst_30 = arith.constant dense<0.000000e+00> : vector<8x8xf32>
    %36 = tpu.matmul %31, %33, %cst_30 {dimension_numbers = #tpu.dot_dimension_numbers<[1], [1], [0], [0], [0, 0, 1, 0], [], []>} : vector<8x32xf32>, vector<8x32xf32>, vector<8x8xf32> -> vector<8x8xf32>
    %c0_31 = arith.constant 0 : index
    %c1 = arith.constant 1 : index
    %37 = vector.load %arg9[%c0_31, %c1] : memref<8x4xf32, #tpu.memory_space<vmem>>, vector<8x1xf32>
    %cst_32 = arith.constant dense<0xFF800000> : vector<8xf32>
    %38 = vector.multi_reduction <maximumf>, %36, %cst_32 [1] : vector<8x8xf32> to vector<8xf32>
    %39 = vector.shape_cast %38 : vector<8xf32> to vector<8x1xf32>
    %40 = arith.maximumf %37, %39 : vector<8x1xf32>
    %41 = arith.subf %37, %40 : vector<8x1xf32>
    %42 = math.exp %41 : vector<8x1xf32>
    %43 = vector.broadcast %40 : vector<8x1xf32> to vector<8x8xf32>
    %44 = arith.subf %36, %43 : vector<8x8xf32>
    %45 = math.exp %44 : vector<8x8xf32>
    %c0_33 = arith.constant 0 : index
    %c1_34 = arith.constant 1 : index
    %46 = vector.load %arg10[%c0_33, %c1_34] : memref<8x4xf32, #tpu.memory_space<vmem>>, vector<8x1xf32>
    %47 = arith.mulf %42, %46 : vector<8x1xf32>
    %cst_35 = arith.constant dense<0.000000e+00> : vector<8xf32>
    %48 = vector.multi_reduction <add>, %45, %cst_35 [1] : vector<8x8xf32> to vector<8xf32>
    %49 = vector.shape_cast %48 : vector<8xf32> to vector<8x1xf32>
    %50 = arith.addf %47, %49 : vector<8x1xf32>
    %c0_36 = arith.constant 0 : index
    %c1_37 = arith.constant 1 : index
    %51 = vector.load %arg10[%c0_36, %c1_37] : memref<8x4xf32, #tpu.memory_space<vmem>>, vector<8x1xf32>
    tpu.vector_store %arg10[%c0_36, %c1_37], %50 {strides = array<i32>} : memref<8x4xf32, #tpu.memory_space<vmem>>, vector<8x1xf32>,
    %c0_38 = arith.constant 0 : index
    %c32_39 = arith.constant 32 : index
    %52 = vector.load %arg11[%c0_38, %c32_39] : memref<8x128xf32, #tpu.memory_space<vmem>>, vector<8x32xf32>
    %53 = vector.broadcast %42 : vector<8x1xf32> to vector<8x32xf32>
    %54 = arith.mulf %53, %52 : vector<8x32xf32>
    %cst_40 = arith.constant dense<0.000000e+00> : vector<8x32xf32>
    %55 = tpu.matmul %45, %35, %cst_40 {dimension_numbers = #tpu.dot_dimension_numbers<[1], [0], [0], [1], [0, 0, 1, 1], [], []>} : vector<8x8xf32>, vector<8x32xf32>, vector<8x32xf32> -> vector<8x32xf32>
    %56 = arith.addf %54, %55 : vector<8x32xf32>
    %c0_41 = arith.constant 0 : index
    %c32_42 = arith.constant 32 : index
    %57 = vector.load %arg11[%c0_41, %c32_42] : memref<8x128xf32, #tpu.memory_space<vmem>>, vector<8x32xf32>
    tpu.vector_store %arg11[%c0_41, %c32_42], %56 {strides = array<i32>} : memref<8x128xf32, #tpu.memory_space<vmem>>, vector<8x32xf32>,
    %c0_43 = arith.constant 0 : index
    %c1_44 = arith.constant 1 : index
    %58 = vector.load %arg9[%c0_43, %c1_44] : memref<8x4xf32, #tpu.memory_space<vmem>>, vector<8x1xf32>
    tpu.vector_store %arg9[%c0_43, %c1_44], %40 {strides = array<i32>} : memref<8x4xf32, #tpu.memory_space<vmem>>, vector<8x1xf32>,
    %c0_45 = arith.constant 0 : index
    %c64 = arith.constant 64 : index
    %59 = vector.load %arg8[%c0_45, %c64] : memref<8x128xf32, #tpu.memory_space<vmem>>, vector<8x32xf32>
    %c0_46 = arith.constant 0 : index
    %c0_47 = arith.constant 0 : index
    %c64_48 = arith.constant 64 : index
    %60 = vector.load %arg5[%c0_46, %c0_47, %c64_48] : memref<1x8x128xf32, #tpu.memory_space<vmem>>, vector<1x8x32xf32>
    %61 = vector.shape_cast %60 : vector<1x8x32xf32> to vector<8x32xf32>
    %c0_49 = arith.constant 0 : index
    %c0_50 = arith.constant 0 : index
    %c64_51 = arith.constant 64 : index
    %62 = vector.load %arg6[%c0_49, %c0_50, %c64_51] : memref<1x8x128xf32, #tpu.memory_space<vmem>>, vector<1x8x32xf32>
    %63 = vector.shape_cast %62 : vector<1x8x32xf32> to vector<8x32xf32>
    %cst_52 = arith.constant dense<0.000000e+00> : vector<8x8xf32>
    %64 = tpu.matmul %59, %61, %cst_52 {dimension_numbers = #tpu.dot_dimension_numbers<[1], [1], [0], [0], [0, 0, 1, 0], [], []>} : vector<8x32xf32>, vector<8x32xf32>, vector<8x8xf32> -> vector<8x8xf32>
    %c0_53 = arith.constant 0 : index
    %c2 = arith.constant 2 : index
    %65 = vector.load %arg9[%c0_53, %c2] : memref<8x4xf32, #tpu.memory_space<vmem>>, vector<8x1xf32>
    %cst_54 = arith.constant dense<0xFF800000> : vector<8xf32>
    %66 = vector.multi_reduction <maximumf>, %64, %cst_54 [1] : vector<8x8xf32> to vector<8xf32>
    %67 = vector.shape_cast %66 : vector<8xf32> to vector<8x1xf32>
    %68 = arith.maximumf %65, %67 : vector<8x1xf32>
    %69 = arith.subf %65, %68 : vector<8x1xf32>
    %70 = math.exp %69 : vector<8x1xf32>
    %71 = vector.broadcast %68 : vector<8x1xf32> to vector<8x8xf32>
    %72 = arith.subf %64, %71 : vector<8x8xf32>
    %73 = math.exp %72 : vector<8x8xf32>
    %c0_55 = arith.constant 0 : index
    %c2_56 = arith.constant 2 : index
    %74 = vector.load %arg10[%c0_55, %c2_56] : memref<8x4xf32, #tpu.memory_space<vmem>>, vector<8x1xf32>
    %75 = arith.mulf %70, %74 : vector<8x1xf32>
    %cst_57 = arith.constant dense<0.000000e+00> : vector<8xf32>
    %76 = vector.multi_reduction <add>, %73, %cst_57 [1] : vector<8x8xf32> to vector<8xf32>
    %77 = vector.shape_cast %76 : vector<8xf32> to vector<8x1xf32>
    %78 = arith.addf %75, %77 : vector<8x1xf32>
    %c0_58 = arith.constant 0 : index
    %c2_59 = arith.constant 2 : index
    %79 = vector.load %arg10[%c0_58, %c2_59] : memref<8x4xf32, #tpu.memory_space<vmem>>, vector<8x1xf32>
    tpu.vector_store %arg10[%c0_58, %c2_59], %78 {strides = array<i32>} : memref<8x4xf32, #tpu.memory_space<vmem>>, vector<8x1xf32>,
    %c0_60 = arith.constant 0 : index
    %c64_61 = arith.constant 64 : index
    %80 = vector.load %arg11[%c0_60, %c64_61] : memref<8x128xf32, #tpu.memory_space<vmem>>, vector<8x32xf32>
    %81 = vector.broadcast %70 : vector<8x1xf32> to vector<8x32xf32>
    %82 = arith.mulf %81, %80 : vector<8x32xf32>
    %cst_62 = arith.constant dense<0.000000e+00> : vector<8x32xf32>
    %83 = tpu.matmul %73, %63, %cst_62 {dimension_numbers = #tpu.dot_dimension_numbers<[1], [0], [0], [1], [0, 0, 1, 1], [], []>} : vector<8x8xf32>, vector<8x32xf32>, vector<8x32xf32> -> vector<8x32xf32>
    %84 = arith.addf %82, %83 : vector<8x32xf32>
    %c0_63 = arith.constant 0 : index
    %c64_64 = arith.constant 64 : index
    %85 = vector.load %arg11[%c0_63, %c64_64] : memref<8x128xf32, #tpu.memory_space<vmem>>, vector<8x32xf32>
    tpu.vector_store %arg11[%c0_63, %c64_64], %84 {strides = array<i32>} : memref<8x128xf32, #tpu.memory_space<vmem>>, vector<8x32xf32>,
    %c0_65 = arith.constant 0 : index
    %c2_66 = arith.constant 2 : index
    %86 = vector.load %arg9[%c0_65, %c2_66] : memref<8x4xf32, #tpu.memory_space<vmem>>, vector<8x1xf32>
    tpu.vector_store %arg9[%c0_65, %c2_66], %68 {strides = array<i32>} : memref<8x4xf32, #tpu.memory_space<vmem>>, vector<8x1xf32>,
    %c0_67 = arith.constant 0 : index
    %c96 = arith.constant 96 : index
    %87 = vector.load %arg8[%c0_67, %c96] : memref<8x128xf32, #tpu.memory_space<vmem>>, vector<8x32xf32>
    %c0_68 = arith.constant 0 : index
    %c0_69 = arith.constant 0 : index
    %c96_70 = arith.constant 96 : index
    %88 = vector.load %arg5[%c0_68, %c0_69, %c96_70] : memref<1x8x128xf32, #tpu.memory_space<vmem>>, vector<1x8x32xf32>
    %89 = vector.shape_cast %88 : vector<1x8x32xf32> to vector<8x32xf32>
    %c0_71 = arith.constant 0 : index
    %c0_72 = arith.constant 0 : index
    %c96_73 = arith.constant 96 : index
    %90 = vector.load %arg6[%c0_71, %c0_72, %c96_73] : memref<1x8x128xf32, #tpu.memory_space<vmem>>, vector<1x8x32xf32>
    %91 = vector.shape_cast %90 : vector<1x8x32xf32> to vector<8x32xf32>
    %cst_74 = arith.constant dense<0.000000e+00> : vector<8x8xf32>
    %92 = tpu.matmul %87, %89, %cst_74 {dimension_numbers = #tpu.dot_dimension_numbers<[1], [1], [0], [0], [0, 0, 1, 0], [], []>} : vector<8x32xf32>, vector<8x32xf32>, vector<8x8xf32> -> vector<8x8xf32>
    %c0_75 = arith.constant 0 : index
    %c3 = arith.constant 3 : index
    %93 = vector.load %arg9[%c0_75, %c3] : memref<8x4xf32, #tpu.memory_space<vmem>>, vector<8x1xf32>
    %cst_76 = arith.constant dense<0xFF800000> : vector<8xf32>
    %94 = vector.multi_reduction <maximumf>, %92, %cst_76 [1] : vector<8x8xf32> to vector<8xf32>
    %95 = vector.shape_cast %94 : vector<8xf32> to vector<8x1xf32>
    %96 = arith.maximumf %93, %95 : vector<8x1xf32>
    %97 = arith.subf %93, %96 : vector<8x1xf32>
    %98 = math.exp %97 : vector<8x1xf32>
    %99 = vector.broadcast %96 : vector<8x1xf32> to vector<8x8xf32>
    %100 = arith.subf %92, %99 : vector<8x8xf32>
    %101 = math.exp %100 : vector<8x8xf32>
    %c0_77 = arith.constant 0 : index
    %c3_78 = arith.constant 3 : index
    %102 = vector.load %arg10[%c0_77, %c3_78] : memref<8x4xf32, #tpu.memory_space<vmem>>, vector<8x1xf32>
    %103 = arith.mulf %98, %102 : vector<8x1xf32>
    %cst_79 = arith.constant dense<0.000000e+00> : vector<8xf32>
    %104 = vector.multi_reduction <add>, %101, %cst_79 [1] : vector<8x8xf32> to vector<8xf32>
    %105 = vector.shape_cast %104 : vector<8xf32> to vector<8x1xf32>
    %106 = arith.addf %103, %105 : vector<8x1xf32>
    %c0_80 = arith.constant 0 : index
    %c3_81 = arith.constant 3 : index
    %107 = vector.load %arg10[%c0_80, %c3_81] : memref<8x4xf32, #tpu.memory_space<vmem>>, vector<8x1xf32>
    tpu.vector_store %arg10[%c0_80, %c3_81], %106 {strides = array<i32>} : memref<8x4xf32, #tpu.memory_space<vmem>>, vector<8x1xf32>,
    %c0_82 = arith.constant 0 : index
    %c96_83 = arith.constant 96 : index
    %108 = vector.load %arg11[%c0_82, %c96_83] : memref<8x128xf32, #tpu.memory_space<vmem>>, vector<8x32xf32>
    %109 = vector.broadcast %98 : vector<8x1xf32> to vector<8x32xf32>
    %110 = arith.mulf %109, %108 : vector<8x32xf32>
    %cst_84 = arith.constant dense<0.000000e+00> : vector<8x32xf32>
    %111 = tpu.matmul %101, %91, %cst_84 {dimension_numbers = #tpu.dot_dimension_numbers<[1], [0], [0], [1], [0, 0, 1, 1], [], []>} : vector<8x8xf32>, vector<8x32xf32>, vector<8x32xf32> -> vector<8x32xf32>
    %112 = arith.addf %110, %111 : vector<8x32xf32>
    %c0_85 = arith.constant 0 : index
    %c96_86 = arith.constant 96 : index
    %113 = vector.load %arg11[%c0_85, %c96_86] : memref<8x128xf32, #tpu.memory_space<vmem>>, vector<8x32xf32>
    tpu.vector_store %arg11[%c0_85, %c96_86], %112 {strides = array<i32>} : memref<8x128xf32, #tpu.memory_space<vmem>>, vector<8x32xf32>,
    %c0_87 = arith.constant 0 : index
    %c3_88 = arith.constant 3 : index
    %114 = vector.load %arg9[%c0_87, %c3_88] : memref<8x4xf32, #tpu.memory_space<vmem>>, vector<8x1xf32>
    tpu.vector_store %arg9[%c0_87, %c3_88], %96 {strides = array<i32>} : memref<8x4xf32, #tpu.memory_space<vmem>>, vector<8x1xf32>,
    %c0_i32_89 = arith.constant 0 : i32
    %115 = arith.cmpi eq, %arg3, %c0_i32_89 : i32
    %116 = arith.extui %115 : i1 to i32
    %c0_i32_90 = arith.constant 0 : i32
    %117 = arith.cmpi ne, %116, %c0_i32_90 : i32
    scf.if %117 {
      %c0_91 = arith.constant 0 : index
      %c0_92 = arith.constant 0 : index
      %118 = vector.load %arg10[%c0_91, %c0_92] : memref<8x4xf32, #tpu.memory_space<vmem>>, vector<8x4xf32>
      %119 = tpu.reciprocal %118 {approx = true} : vector<8x4xf32> -> vector<8x4xf32>
      %c0_93 = arith.constant 0 : index
      %c0_94 = arith.constant 0 : index
      %120 = vector.load %arg11[%c0_93, %c0_94] : memref<8x128xf32, #tpu.memory_space<vmem>>, vector<8x32xf32>
      %121 = vector.extract_strided_slice %119 {offsets = [0, 0], sizes = [8, 1], strides = [1, 1]} : vector<8x4xf32> to vector<8x1xf32>
      %122 = vector.broadcast %121 : vector<8x1xf32> to vector<8x32xf32>
      %123 = arith.mulf %120, %122 : vector<8x32xf32>
      %c0_95 = arith.constant 0 : index
      %c0_96 = arith.constant 0 : index
      %c0_97 = arith.constant 0 : index
      %124 = vector.load %arg7[%c0_95, %c0_96, %c0_97] : memref<1x8x128xf32, #tpu.memory_space<vmem>>, vector<1x8x32xf32>
      %125 = vector.shape_cast %124 : vector<1x8x32xf32> to vector<8x32xf32>
      %126 = vector.shape_cast %123 : vector<8x32xf32> to vector<1x8x32xf32>
      tpu.vector_store %arg7[%c0_95, %c0_96, %c0_97], %126 {strides = array<i32>} : memref<1x8x128xf32, #tpu.memory_space<vmem>>, vector<1x8x32xf32>,
      %c0_98 = arith.constant 0 : index
      %c32_99 = arith.constant 32 : index
      %127 = vector.load %arg11[%c0_98, %c32_99] : memref<8x128xf32, #tpu.memory_space<vmem>>, vector<8x32xf32>
      %128 = vector.extract_strided_slice %119 {offsets = [0, 1], sizes = [8, 1], strides = [1, 1]} : vector<8x4xf32> to vector<8x1xf32>
      %129 = vector.broadcast %128 : vector<8x1xf32> to vector<8x32xf32>
      %130 = arith.mulf %127, %129 : vector<8x32xf32>
      %c0_100 = arith.constant 0 : index
      %c0_101 = arith.constant 0 : index
      %c32_102 = arith.constant 32 : index
      %131 = vector.load %arg7[%c0_100, %c0_101, %c32_102] : memref<1x8x128xf32, #tpu.memory_space<vmem>>, vector<1x8x32xf32>
      %132 = vector.shape_cast %131 : vector<1x8x32xf32> to vector<8x32xf32>
      %133 = vector.shape_cast %130 : vector<8x32xf32> to vector<1x8x32xf32>
      tpu.vector_store %arg7[%c0_100, %c0_101, %c32_102], %133 {strides = array<i32>} : memref<1x8x128xf32, #tpu.memory_space<vmem>>, vector<1x8x32xf32>,
      %c0_103 = arith.constant 0 : index
      %c64_104 = arith.constant 64 : index
      %134 = vector.load %arg11[%c0_103, %c64_104] : memref<8x128xf32, #tpu.memory_space<vmem>>, vector<8x32xf32>
      %135 = vector.extract_strided_slice %119 {offsets = [0, 2], sizes = [8, 1], strides = [1, 1]} : vector<8x4xf32> to vector<8x1xf32>
      %136 = vector.broadcast %135 : vector<8x1xf32> to vector<8x32xf32>
      %137 = arith.mulf %134, %136 : vector<8x32xf32>
      %c0_105 = arith.constant 0 : index
      %c0_106 = arith.constant 0 : index
      %c64_107 = arith.constant 64 : index
      %138 = vector.load %arg7[%c0_105, %c0_106, %c64_107] : memref<1x8x128xf32, #tpu.memory_space<vmem>>, vector<1x8x32xf32>
      %139 = vector.shape_cast %138 : vector<1x8x32xf32> to vector<8x32xf32>
      %140 = vector.shape_cast %137 : vector<8x32xf32> to vector<1x8x32xf32>
      tpu.vector_store %arg7[%c0_105, %c0_106, %c64_107], %140 {strides = array<i32>} : memref<1x8x128xf32, #tpu.memory_space<vmem>>, vector<1x8x32xf32>,
      %c0_108 = arith.constant 0 : index
      %c96_109 = arith.constant 96 : index
      %141 = vector.load %arg11[%c0_108, %c96_109] : memref<8x128xf32, #tpu.memory_space<vmem>>, vector<8x32xf32>
      %142 = vector.extract_strided_slice %119 {offsets = [0, 3], sizes = [8, 1], strides = [1, 1]} : vector<8x4xf32> to vector<8x1xf32>
      %143 = vector.broadcast %142 : vector<8x1xf32> to vector<8x32xf32>
      %144 = arith.mulf %141, %143 : vector<8x32xf32>
      %c0_110 = arith.constant 0 : index
      %c0_111 = arith.constant 0 : index
      %c96_112 = arith.constant 96 : index
      %145 = vector.load %arg7[%c0_110, %c0_111, %c96_112] : memref<1x8x128xf32, #tpu.memory_space<vmem>>, vector<1x8x32xf32>
      %146 = vector.shape_cast %145 : vector<1x8x32xf32> to vector<8x32xf32>
      %147 = vector.shape_cast %144 : vector<8x32xf32> to vector<1x8x32xf32>
      tpu.vector_store %arg7[%c0_110, %c0_111, %c96_112], %147 {strides = array<i32>} : memref<1x8x128xf32, #tpu.memory_space<vmem>>, vector<1x8x32xf32>,
    } else {
    }
    return
  }
  func.func @transform_0(%arg0: i32, %arg1: i32, %arg2: i32, %arg3: i32) -> (i32, i32, i32) {
    %c0_i32 = arith.constant 0 : i32
    return %arg0, %arg2, %arg1 : i32, i32, i32
  }
  func.func @transform_1(%arg0: i32, %arg1: i32, %arg2: i32, %arg3: i32) -> (i32, i32, i32) {
    %c0_i32 = arith.constant 0 : i32
    return %arg0, %arg3, %arg1 : i32, i32, i32
  }
  func.func @transform_2(%arg0: i32, %arg1: i32, %arg2: i32, %arg3: i32) -> (i32, i32, i32) {
    %c0_i32 = arith.constant 0 : i32
    return %arg0, %arg3, %arg1 : i32, i32, i32
  }
  func.func @transform_3(%arg0: i32, %arg1: i32, %arg2: i32, %arg3: i32) -> (i32, i32, i32) {
    %c0_i32 = arith.constant 0 : i32
    return %arg0, %arg2, %arg1 : i32, i32, i32
  }
}

</mosaic_0001>

<llo_original>
// kernel: tpu_custom_call.1
$region0: #{tpu_custom_call.1}
  #allocation0 [shape = 'u32[]', space=smem, size = 0x4, offset = 0x4, fixed_abs, tag = 'smem constant byte address 0x4 - core index']
  #allocation1 [shape = 'u32[72,128]{1,0:T(1,128)}', space=vmem, size = 0x9000, scoped, tag = 'internal scratch']
  #allocation2 [shape = 'f32[8,128]{1,0:T(8,128)}', space=vmem, size = 0x1000, scoped, tag = 'scratch operand']
  #allocation3 [shape = 'f32[8,4]{1,0:T(8,128)}', space=vmem, size = 0x1000, scoped, tag = 'scratch operand']
  #allocation4 [shape = 'f32[8,4]{1,0:T(8,128)}', space=vmem, size = 0x1000, scoped, tag = 'scratch operand']
  #allocation5 [shape = 'f32[8,128]{1,0:T(8,128)}', space=vmem, size = 0x1000, scoped, tag = 'scratch operand']
  %s0 = inlined_call_operand.hbm [shape: f32[2,8,128], index: 0, kind: input, shape index: {}]
  %s1 = inlined_call_operand.hbm [shape: f32[2,8,128], index: 1, kind: input, shape index: {}]
  %s2 = inlined_call_operand.hbm [shape: f32[2,8,128], index: 2, kind: input, shape index: {}]
  %s3 = inlined_call_operand.hbm [shape: f32[2,8,128], index: 3, kind: output, shape index: {}]
  %s4 = sld [smem:[#allocation0]]
  $region65: #{tpu_custom_call.1} parent=0
    _
  %s6 = ssub.s32 1, %s4
  %s7 = scalar_select 0, %s6, %s4
  $region1: #{tpu_custom_call.1} parent=0
    #allocation6 [shape = 'u8[8192]{0}', space=vmem, size = 0x2000, scoped, tag = 'input window, operand 0']
    #allocation7 [shape = 's32[2]{0}', space=sflag, size = 0x8, scoped, tag = 'scoped memory for tpu_custom_call.1']
    #allocation8 [shape = 's32[2]{0}', space=sflag, size = 0x8, scoped, tag = 'scoped memory for tpu_custom_call.1']
    #allocation9 [shape = 'u8[8192]{0}', space=vmem, size = 0x2000, scoped, tag = 'input window, operand 1']
    #allocation10 [shape = 's32[2]{0}', space=sflag, size = 0x8, scoped, tag = 'scoped memory for tpu_custom_call.1']
    #allocation11 [shape = 'u8[8192]{0}', space=vmem, size = 0x2000, scoped, tag = 'input window, operand 2']
    #allocation12 [shape = 'u8[8192]{0}', space=vmem, size = 0x2000, scoped, tag = 'output window, operand 0']
    %8 = vsyncpa [#allocation7], 0
    %s9 = scalar_lea.sflag [#allocation7], 1
    %10 = vsyncpa %s9, 0
    %11 = vsyncpa [#allocation10], 0
    %s12 = scalar_lea.sflag [#allocation10], 1
    %13 = vsyncpa %s12, 0
    %14 = vsyncpa [#allocation8], 0
    %s15 = scalar_lea.sflag [#allocation8], 1
    %16 = vsyncpa %s15, 0
    loop: start=0, step=1, limit=4
    $region2: #{tpu_custom_call.1} parent=1 // loop_pre_header
      _
    $region3: #{tpu_custom_call.1} parent=1 // loop_header
      %s18 = sphi 0, %s22
      %p19 = scmp.ge.s32.totalorder %s18, 4
      %s25 = sphi 0, %s51
      %s26 = sphi 0, %s47
      %s27 = sphi 0, %s43
      %s28 = sphi 0, %s39
      %s29 = sphi 0, %s25
      %s30 = sphi 0, %s26
      %s31 = sphi 0, %s27
      %s32 = sphi 0, %s28
      %s33 = sphi 0, %s29
      %s34 = sphi 0, %s30
      %s35 = sphi 0, %s31
      %s36 = sphi 0, %s32
      %s58 = sphi 0, %s60
      %s61 = sphi 0, %s58
      %s62 = sphi 0, %s61
      %s78 = sphi 0, %s62
      %s88 = sphi 0, %s90
      %s91 = sphi 0, %s88
      %s92 = sphi 0, %s91
      %s108 = sphi 0, %s92
      %s118 = sphi 0, %s120
      %s121 = sphi 0, %s118
      %s122 = sphi 0, %s121
      %s138 = sphi 0, %s122
      %s148 = sphi 0, %s150
      %s151 = sphi 0, %s148
      %s152 = sphi 0, %s151
      %s168 = sphi 0, %s152
    $region4: #{tpu_custom_call.1} parent=1 // loop_header_branch
      %21 = sbr.rel (%p19) target = $region8
    $region5: #{tpu_custom_call.1} parent=1 // loop_body
      %s23 = ssub.s32 %s18, 1
      %s24 = ssub.s32 %s18, 2
      %s37 = sadd.s32 1, %s28
      %p38 = scmp.ge.s32.totalorder %s37, 1
      %s39 = scalar_select %p38, 0, %s37
      %s40 = sadd.s32 1, %s27
      %s41 = scalar_select %p38, %s40, %s27
      %p42 = scmp.ge.s32.totalorder %s41, 1
      %s43 = scalar_select %p42, 0, %s41
      %s44 = sadd.s32 1, %s26
      %s45 = scalar_select %p42, %s44, %s26
      %p46 = scmp.ge.s32.totalorder %s45, 1
      %s47 = scalar_select %p46, 0, %s45
      %s48 = sadd.s32 1, %s25
      %s49 = scalar_select %p46, %s48, %s25
      %p50 = scmp.ge.s32.totalorder %s49, 2
      %s51 = scalar_select %p50, 0, %s49
      %s52 = ssub.s32 %s25, %s51
      %s53 = ssub.s32 %s27, %s43
      %s54 = sor.u32 %s52, %s53
      %s55 = ssub.s32 %s26, %s47
      %s56 = sor.u32 %s54, %s55
      %p57 = scmp.eq.s32.totalorder %s56, 0
      %s59 = sadd.s32 %s58, 1
      %s60 = scalar_select %p57, %s58, %s59
      %p63 = pneg %p57
      %p64 = scmp.eq.s32.totalorder %s18, 1
      %p65 = por %p63, %p64
      %p66 = scmp.ne.s32.totalorder %s58, %s61
      %p67 = scmp.eq.s32.totalorder %s18, 0
      %p68 = por %p66, %p67
      %p69 = scmp.ne.s32.totalorder %s58, %s61
      %p70 = scmp.eq.s32.totalorder %s23, 1
      %p71 = por %p69, %p70
      %p72 = scmp.ne.s32.totalorder %s61, %s62
      %p73 = scmp.eq.s32.totalorder %s23, 0
      %p74 = por %p72, %p73
      %p75 = scmp.ne.s32.totalorder %s61, %s62
      %p76 = scmp.eq.s32.totalorder %s24, 1
      %p77 = por %p75, %p76
      %p79 = scmp.ne.s32.totalorder %s62, %s78
      %p80 = scmp.eq.s32.totalorder %s24, 0
      %p81 = por %p79, %p80
      %s82 = ssub.s32 %s25, %s51
      %s83 = ssub.s32 %s28, %s39
      %s84 = sor.u32 %s82, %s83
      %s85 = ssub.s32 %s26, %s47
      %s86 = sor.u32 %s84, %s85
      %p87 = scmp.eq.s32.totalorder %s86, 0
      %s89 = sadd.s32 %s88, 1
      %s90 = scalar_select %p87, %s88, %s89
      %p93 = pneg %p87
      %p94 = scmp.eq.s32.totalorder %s18, 1
      %p95 = por %p93, %p94
      %p96 = scmp.ne.s32.totalorder %s88, %s91
      %p97 = scmp.eq.s32.totalorder %s18, 0
      %p98 = por %p96, %p97
      %p99 = scmp.ne.s32.totalorder %s88, %s91
      %p100 = scmp.eq.s32.totalorder %s23, 1
      %p101 = por %p99, %p100
      %p102 = scmp.ne.s32.totalorder %s91, %s92
      %p103 = scmp.eq.s32.totalorder %s23, 0
      %p104 = por %p102, %p103
      %p105 = scmp.ne.s32.totalorder %s91, %s92
      %p106 = scmp.eq.s32.totalorder %s24, 1
      %p107 = por %p105, %p106
      %p109 = scmp.ne.s32.totalorder %s92, %s108
      %p110 = scmp.eq.s32.totalorder %s24, 0
      %p111 = por %p109, %p110
      %s112 = ssub.s32 %s25, %s51
      %s113 = ssub.s32 %s28, %s39
      %s114 = sor.u32 %s112, %s113
      %s115 = ssub.s32 %s26, %s47
      %s116 = sor.u32 %s114, %s115
      %p117 = scmp.eq.s32.totalorder %s116, 0
      %s119 = sadd.s32 %s118, 1
      %s120 = scalar_select %p117, %s118, %s119
      %p123 = pneg %p117
      %p124 = scmp.eq.s32.totalorder %s18, 1
      %p125 = por %p123, %p124
      %p126 = scmp.ne.s32.totalorder %s118, %s121
      %p127 = scmp.eq.s32.totalorder %s18, 0
      %p128 = por %p126, %p127
      %p129 = scmp.ne.s32.totalorder %s118, %s121
      %p130 = scmp.eq.s32.totalorder %s23, 1
      %p131 = por %p129, %p130
      %p132 = scmp.ne.s32.totalorder %s121, %s122
      %p133 = scmp.eq.s32.totalorder %s23, 0
      %p134 = por %p132, %p133
      %p135 = scmp.ne.s32.totalorder %s121, %s122
      %p136 = scmp.eq.s32.totalorder %s24, 1
      %p137 = por %p135, %p136
      %p139 = scmp.ne.s32.totalorder %s122, %s138
      %p140 = scmp.eq.s32.totalorder %s24, 0
      %p141 = por %p139, %p140
      %s142 = ssub.s32 %s25, %s51
      %s143 = ssub.s32 %s27, %s43
      %s144 = sor.u32 %s142, %s143
      %s145 = ssub.s32 %s26, %s47
      %s146 = sor.u32 %s144, %s145
      %p147 = scmp.eq.s32.totalorder %s146, 0
      %s149 = sadd.s32 %s148, 1
      %s150 = scalar_select %p147, %s148, %s149
      %p153 = pneg %p147
      %p154 = scmp.eq.s32.totalorder %s18, 1
      %p155 = por %p153, %p154
      %p156 = scmp.ne.s32.totalorder %s148, %s151
      %p157 = scmp.eq.s32.totalorder %s18, 0
      %p158 = por %p156, %p157
      %p159 = scmp.ne.s32.totalorder %s148, %s151
      %p160 = scmp.eq.s32.totalorder %s23, 1
      %p161 = por %p159, %p160
      %p162 = scmp.ne.s32.totalorder %s151, %s152
      %p163 = scmp.eq.s32.totalorder %s23, 0
      %p164 = por %p162, %p163
      %p165 = scmp.ne.s32.totalorder %s151, %s152
      %p166 = scmp.eq.s32.totalorder %s24, 1
      %p167 = por %p165, %p166
      %p169 = scmp.ne.s32.totalorder %s152, %s168
      %p170 = scmp.eq.s32.totalorder %s24, 0
      %p171 = por %p169, %p170
      %p172 = scmp.le.s32.totalorder 1, %s18
      %p173 = scmp.lt.s32.totalorder %s18, 3
      %p174 = pnand %p172, %p173
      %p175 = pneg %p174
      // Predicated region
      $region9: #{tpu_custom_call.1} parent=5 // pred_check
        _
      $region10: #{tpu_custom_call.1} parent=5 // pred_check_branch
        %177 = sbr.rel (%p174) target = $region12
      $region11: #{tpu_custom_call.1} parent=5 // pred_region
        %s178 = ssub.s32 %s18, 1
      $region12: #{tpu_custom_call.1} parent=5 // pred_fallthru
        _
      %p179 = scmp.lt.s32.totalorder %s18, 2
      // Predicated region
      $region13: #{tpu_custom_call.1} parent=5 // pred_check
        %p180 = pneg %p179
      $region14: #{tpu_custom_call.1} parent=5 // pred_check_branch
        %182 = sbr.rel (%p180) target = $region16
      $region15: #{tpu_custom_call.1} parent=5 // pred_region
        // Predicated region
        $region17: #{tpu_custom_call.1} parent=15 // pred_check
          %p183 = pneg %p68
        $region18: #{tpu_custom_call.1} parent=15 // pred_check_branch
          %185 = sbr.rel (%p183) target = $region20
        $region19: #{tpu_custom_call.1} parent=15 // pred_region
          %s186 = sand.u32 %s58, 1
          %s187 = scalar_lea.sflag [#allocation7], %s186
          %s188 = sand.u32 %s58, 1
          %s189 = smul.addr %s188, 8
          %s190 = scalar_lea.vmem [#allocation6], %s189
          %192 = vsyncadd %s187, 0
          %s193 = sadd.s32 %s26, %s27
          %s194 = sadd.s32 %s193, %s25
          %s195 = smul.addr %s194, 8
          %s196 = scalar_lea.hbm %s0, %s195
          %s198 = sshll.u32 %s196, 4
          %s199 = int_to_ptr.hbm [resolvable:$true] %s198
          %s200 = sshll.u32 %s190, 4
          %s201 = int_to_ptr.vmem [resolvable:$true] %s200
          %203 = dma.hbm_to_vmem [thread:$0]  %s199, 128, %s201, %s187
        $region20: #{tpu_custom_call.1} parent=15 // pred_fallthru
          _
        // Predicated region
        $region21: #{tpu_custom_call.1} parent=15 // pred_check
          %p204 = pneg %p98
        $region22: #{tpu_custom_call.1} parent=15 // pred_check_branch
          %206 = sbr.rel (%p204) target = $region24
        $region23: #{tpu_custom_call.1} parent=15 // pred_region
          %s207 = sand.u32 %s18, 1
          %s208 = scalar_lea.sflag [#allocation10], %s207
          %s209 = sand.u32 %s88, 1
          %s210 = smul.addr %s209, 8
          %s211 = scalar_lea.vmem [#allocation9], %s210
          %213 = vsyncadd %s208, 0
          %s214 = sadd.s32 %s26, %s28
          %s215 = sadd.s32 %s214, %s25
          %s216 = smul.addr %s215, 8
          %s217 = scalar_lea.hbm %s1, %s216
          %s219 = sshll.u32 %s217, 4
          %s220 = int_to_ptr.hbm [resolvable:$true] %s219
          %s221 = sshll.u32 %s211, 4
          %s222 = int_to_ptr.vmem [resolvable:$true] %s221
          %224 = dma.hbm_to_vmem [thread:$0]  %s220, 128, %s222, %s208
        $region24: #{tpu_custom_call.1} parent=15 // pred_fallthru
          _
        // Predicated region
        $region25: #{tpu_custom_call.1} parent=15 // pred_check
          %p225 = pneg %p128
        $region26: #{tpu_custom_call.1} parent=15 // pred_check_branch
          %227 = sbr.rel (%p225) target = $region28
        $region27: #{tpu_custom_call.1} parent=15 // pred_region
          %s228 = sand.u32 %s18, 1
          %s229 = scalar_lea.sflag [#allocation10], %s228
          %s230 = sand.u32 %s118, 1
          %s231 = smul.addr %s230, 8
          %s232 = scalar_lea.vmem [#allocation11], %s231
          %234 = vsyncadd %s229, 0
          %s235 = sadd.s32 %s26, %s28
          %s236 = sadd.s32 %s235, %s25
          %s237 = smul.addr %s236, 8
          %s238 = scalar_lea.hbm %s2, %s237
          %s240 = sshll.u32 %s238, 4
          %s241 = int_to_ptr.hbm [resolvable:$true] %s240
          %s242 = sshll.u32 %s232, 4
          %s243 = int_to_ptr.vmem [resolvable:$true] %s242
          %245 = dma.hbm_to_vmem [thread:$0]  %s241, 128, %s243, %s229
        $region28: #{tpu_custom_call.1} parent=15 // pred_fallthru
          _
      $region16: #{tpu_custom_call.1} parent=5 // pred_fallthru
        _
      %p246 = scmp.le.s32.totalorder 1, %s18
      %p247 = scmp.lt.s32.totalorder %s18, 3
      %p248 = pnand %p246, %p247
      %p249 = pneg %p248
      // Predicated region
      $region29: #{tpu_custom_call.1} parent=5 // pred_check
        _
      $region30: #{tpu_custom_call.1} parent=5 // pred_check_branch
        %251 = sbr.rel (%p248) target = $region32
      $region31: #{tpu_custom_call.1} parent=5 // pred_region
        %s252 = ssub.s32 %s18, 1
        %s253 = sand.u32 %s61, 1
        %s254 = scalar_lea.sflag [#allocation7], %s253
        %s255 = sand.u32 %s61, 1
        %s256 = smul.addr %s255, 8
        %s257 = scalar_lea.vmem [#allocation6], %s256
        // Predicated region
        $region33: #{tpu_custom_call.1} parent=31 // pred_check
          %p258 = pneg %p74
        $region34: #{tpu_custom_call.1} parent=31 // pred_check_branch
          %260 = sbr.rel (%p258) target = $region36
        $region35: #{tpu_custom_call.1} parent=31 // pred_region
          %262 = dma.done %s254, 128
        $region36: #{tpu_custom_call.1} parent=31 // pred_fallthru
          _
        %s263 = sand.u32 %s23, 1
        %s264 = scalar_lea.sflag [#allocation10], %s263
        %s265 = sand.u32 %s91, 1
        %s266 = smul.addr %s265, 8
        %s267 = scalar_lea.vmem [#allocation9], %s266
        // Predicated region
        $region37: #{tpu_custom_call.1} parent=31 // pred_check
          %p268 = pneg %p104
        $region38: #{tpu_custom_call.1} parent=31 // pred_check_branch
          %270 = sbr.rel (%p268) target = $region40
        $region39: #{tpu_custom_call.1} parent=31 // pred_region
          %272 = dma.done %s264, 128
        $region40: #{tpu_custom_call.1} parent=31 // pred_fallthru
          _
        %s273 = sand.u32 %s23, 1
        %s274 = scalar_lea.sflag [#allocation10], %s273
        %s275 = sand.u32 %s121, 1
        %s276 = smul.addr %s275, 8
        %s277 = scalar_lea.vmem [#allocation11], %s276
        // Predicated region
        $region41: #{tpu_custom_call.1} parent=31 // pred_check
          %p278 = pneg %p134
        $region42: #{tpu_custom_call.1} parent=31 // pred_check_branch
          %280 = sbr.rel (%p278) target = $region44
        $region43: #{tpu_custom_call.1} parent=31 // pred_region
          %282 = dma.done %s274, 128
        $region44: #{tpu_custom_call.1} parent=31 // pred_fallthru
          _
        %s283 = sand.u32 %s61, 1
        %s284 = scalar_lea.sflag [#allocation7], %s283
        %s285 = sand.u32 %s61, 1
        %s286 = smul.addr %s285, 8
        %s287 = scalar_lea.vmem [#allocation6], %s286
        %p288 = pneg %p74
        %p289 = pneg %p71
        %s290 = sand.u32 %s23, 1
        %s291 = scalar_lea.sflag [#allocation10], %s290
        %s292 = sand.u32 %s91, 1
        %s293 = smul.addr %s292, 8
        %s294 = scalar_lea.vmem [#allocation9], %s293
        %p295 = pneg %p104
        %p296 = pneg %p101
        %s297 = sand.u32 %s23, 1
        %s298 = scalar_lea.sflag [#allocation10], %s297
        %s299 = sand.u32 %s121, 1
        %s300 = smul.addr %s299, 8
        %s301 = scalar_lea.vmem [#allocation11], %s300
        %p302 = pneg %p134
        %p303 = pneg %p131
        %p304 = pneg %p164
        %p305 = pneg %p161
        %s306 = sand.u32 %s151, 1
        %s307 = scalar_lea.sflag [#allocation8], %s306
        %s308 = sand.u32 %s151, 1
        %s309 = smul.addr %s308, 8
        %s310 = scalar_lea.vmem [#allocation12], %s309
        %p311 = scmp.eq.s32.totalorder %s32, 0
        // Predicated region
        $region45: #{tpu_custom_call.1} parent=31 // pred_check
          %p312 = pneg %p311
        $region46: #{tpu_custom_call.1} parent=31 // pred_check_branch
          %314 = sbr.rel (%p312) target = $region48
        $region47: #{tpu_custom_call.1} parent=31 // pred_region
          %v315 = vld [vmem:[%s257] sm:$0xff]
          %v316 = vmul.f32 %v315, 0.17677669
          %317 = vst [vmem:[#allocation2] sm:$0xff] %v316
          %vm318 = vcmask 31744
          %319 = vst.msk [vmem:[#allocation3] sm:$0xff] %vm318, -inf
          %320 = vst.msk [vmem:[#allocation4] sm:$0xff] %vm318, 0.0
          %321 = vst [vmem:[#allocation5] sm:$0xff] 0.0
        $region48: #{tpu_custom_call.1} parent=31 // pred_fallthru
          _
        %v322 = vld [vmem:[#allocation2] sm:$0xff]
        %v323 = vld [vmem:[%s267] sm:$0xff]
        %v324 = vld [vmem:[%s277] sm:$0xff]
        %vm325 = vcmask 261120
        %v327 = vsel %vm325, %v322, 0
        %v330 = vsel %vm325, %v323, 0
        %332 = vmatpush.xpose.msra.mxu0 0.0
        %333 = vmatpush.xpose.msra.mxu0 0.0
        %334 = vmatpush.xpose.msra.mxu0 0.0
        %335 = vmatpush.xpose.msra.mxu0 0.0
        %336 = vmatpush.xpose.msra.mxu0 0.0
        %337 = vmatpush.xpose.msra.mxu0 0.0
        %338 = vmatpush.xpose.msra.mxu0 0.0
        %339 = vmatpush.xpose.msra.mxu0 0.0
        %340 = vmatpush.xpose.msra.mxu0 0.0
        %341 = vmatpush.xpose.msra.mxu0 0.0
        %342 = vmatpush.xpose.msra.mxu0 0.0
        %343 = vmatpush.xpose.msra.mxu0 0.0
        %344 = vmatpush.xpose.msra.mxu0 0.0
        %345 = vmatpush.xpose.msra.mxu0 0.0
        %346 = vmatpush.xpose.msra.mxu0 0.0
        %347 = vmatpush.xpose.msra.mxu0 %v330
        %348 = vmatmul.f32.gmra.mxu0 %v327
        %v349 = vpop.f32.mrf.mxu0
        %v350 = vadd.f32 0.0, %v349
        %351 = vdwg.mxu0
        %v352 = vld [vmem:[#allocation3] sm:$0xff]
        %vm353 = vcmask 64512
        %v354 = vsel %vm353, %v350, -inf
        %355 = vmax.xlane.f32.xlu0 %v354
        %v356 = vpop.xlane.xlu0 %355
        %v357 = vmax.f32 %v352, %v356
        %v358 = vsub.f32 %v352, %v357
        %v359 = vmul.f32 %v358, 1.442695
        %v360 = vpow.pop %v359
        %362 = vset.pattern.permute.xlu0 0
        %363 = vperm.xlu0 %362, %v357
        %v364 = vpop.permute.xlu0 %363
        %v366 = vsub.f32 %v350, %v364
        %v367 = vmul.f32 %v366, 1.442695
        %v368 = vpow.pop %v367
        %v369 = vld [vmem:[#allocation4] sm:$0xff]
        %v370 = vmul.f32 %v360, %v369
        %v371 = vsel %vm353, %v368, 0.0
        %372 = vadd.xlane.f32.xlu0 %v371
        %v373 = vpop.xlane.xlu0 %372
        %v374 = vadd.f32 %v370, %v373
        %vm375 = vcmask 7168
        %376 = vst.msk [vmem:[#allocation4] sm:$0xff] %vm375, %v374
        %v377 = vld [vmem:[#allocation5] sm:$0xff]
        %379 = vset.pattern.permute.xlu0 0
        %380 = vperm.xlu0 %379, %v360
        %v381 = vpop.permute.xlu0 %380
        %v383 = vmul.f32 %v381, %v377
        %v385 = vsel %vm353, %v368, 0
        %387 = vmatpush.msra.mxu0 0.0
        %388 = vmatpush.msra.mxu0 0.0
        %389 = vmatpush.msra.mxu0 0.0
        %390 = vmatpush.msra.mxu0 0.0
        %391 = vmatpush.msra.mxu0 0.0
        %392 = vmatpush.msra.mxu0 0.0
        %393 = vmatpush.msra.mxu0 0.0
        %394 = vmatpush.msra.mxu0 0.0
        %395 = vmatpush.msra.mxu0 0.0
        %396 = vmatpush.msra.mxu0 0.0
        %397 = vmatpush.msra.mxu0 0.0
        %398 = vmatpush.msra.mxu0 0.0
        %399 = vmatpush.msra.mxu0 0.0
        %400 = vmatpush.msra.mxu0 0.0
        %401 = vmatpush.msra.mxu0 0.0
        %402 = vmatpush.msra.mxu0 %v324
        %403 = vmatmul.f32.gmra.mxu0 %v385
        %v404 = vpop.f32.mrf.mxu0
        %v405 = vadd.f32 0.0, %v404
        %406 = vdwg.mxu0
        %v407 = vadd.f32 %v383, %v405
        %408 = vst.msk [vmem:[#allocation5] sm:$0xff] %vm325, %v407
        %409 = vst.msk [vmem:[#allocation3] sm:$0xff] %vm375, %v357
        %v410 = vld [vmem:[#allocation2] sm:$0xff]
        %v411 = vld [vmem:[%s267] sm:$0xff]
        %v412 = vld [vmem:[%s277] sm:$0xff]
        %414 = vrot.lane.b32.xlu0 %v410, 96
        %v415 = vpop.permute.xlu0 %414
        %417 = vrot.lane.b32.xlu0 %v411, 96
        %v418 = vpop.permute.xlu0 %417
        %v419 = vsel %vm325, %v415, 0
        %v421 = vsel %vm325, %v418, 0
        %423 = vmatpush.xpose.msra.mxu0 0.0
        %424 = vmatpush.xpose.msra.mxu0 0.0
        %425 = vmatpush.xpose.msra.mxu0 0.0
        %426 = vmatpush.xpose.msra.mxu0 0.0
        %427 = vmatpush.xpose.msra.mxu0 0.0
        %428 = vmatpush.xpose.msra.mxu0 0.0
        %429 = vmatpush.xpose.msra.mxu0 0.0
        %430 = vmatpush.xpose.msra.mxu0 0.0
        %431 = vmatpush.xpose.msra.mxu0 0.0
        %432 = vmatpush.xpose.msra.mxu0 0.0
        %433 = vmatpush.xpose.msra.mxu0 0.0
        %434 = vmatpush.xpose.msra.mxu0 0.0
        %435 = vmatpush.xpose.msra.mxu0 0.0
        %436 = vmatpush.xpose.msra.mxu0 0.0
        %437 = vmatpush.xpose.msra.mxu0 0.0
        %438 = vmatpush.xpose.msra.mxu0 %v421
        %439 = vmatmul.f32.gmra.mxu0 %v419
        %v440 = vpop.f32.mrf.mxu0
        %v441 = vadd.f32 0.0, %v440
        %442 = vdwg.mxu0
        %v443 = vld [vmem:[#allocation3] sm:$0xff]
        %v444 = vsel %vm353, %v441, -inf
        %445 = vmax.xlane.f32.xlu0 %v444
        %v446 = vpop.xlane.xlu0 %445
        %v447 = vmax.f32 %v443, %v446
        %v448 = vsub.f32 %v443, %v447
        %v449 = vmul.f32 %v448, 1.442695
        %v450 = vpow.pop %v449
        %452 = vset.pattern.permute.xlu0 1
        %453 = vperm.xlu0 %452, %v447
        %v454 = vpop.permute.xlu0 %453
        %v456 = vsub.f32 %v441, %v454
        %v457 = vmul.f32 %v456, 1.442695
        %v458 = vpow.pop %v457
        %v459 = vld [vmem:[#allocation4] sm:$0xff]
        %v460 = vmul.f32 %v450, %v459
        %v461 = vsel %vm353, %v458, 0.0
        %462 = vadd.xlane.f32.xlu0 %v461
        %v463 = vpop.xlane.xlu0 %462
        %v464 = vadd.f32 %v460, %v463
        %vm465 = vcmask 15368
        %466 = vst.msk [vmem:[#allocation4] sm:$0xff] %vm465, %v464
        %v467 = vld [vmem:[#allocation5] sm:$0xff]
        %469 = vset.pattern.permute.xlu0 1
        %470 = vperm.xlu0 %469, %v450
        %v471 = vpop.permute.xlu0 %470
        %v473 = vmul.f32 %v471, %v467
        %475 = vrot.lane.b32.xlu0 %v412, 96
        %v476 = vpop.permute.xlu0 %475
        %v479 = vsel %vm353, %v458, 0
        %481 = vmatpush.msra.mxu0 0.0
        %482 = vmatpush.msra.mxu0 0.0
        %483 = vmatpush.msra.mxu0 0.0
        %484 = vmatpush.msra.mxu0 0.0
        %485 = vmatpush.msra.mxu0 0.0
        %486 = vmatpush.msra.mxu0 0.0
        %487 = vmatpush.msra.mxu0 0.0
        %488 = vmatpush.msra.mxu0 0.0
        %489 = vmatpush.msra.mxu0 0.0
        %490 = vmatpush.msra.mxu0 0.0
        %491 = vmatpush.msra.mxu0 0.0
        %492 = vmatpush.msra.mxu0 0.0
        %493 = vmatpush.msra.mxu0 0.0
        %494 = vmatpush.msra.mxu0 0.0
        %495 = vmatpush.msra.mxu0 0.0
        %496 = vmatpush.msra.mxu0 %v476
        %497 = vmatmul.f32.gmra.mxu0 %v479
        %v498 = vpop.f32.mrf.mxu0
        %v499 = vadd.f32 0.0, %v498
        %500 = vdwg.mxu0
        %502 = vrot.lane.b32.xlu0 %v499, 32
        %v503 = vpop.permute.xlu0 %502
        %v505 = vadd.f32 %v473, %v503
        %vm506 = vcmask 523520
        %507 = vst.msk [vmem:[#allocation5] sm:$0xff] %vm506, %v505
        %508 = vst.msk [vmem:[#allocation3] sm:$0xff] %vm465, %v447
        %v509 = vld [vmem:[#allocation2] sm:$0xff]
        %v510 = vld [vmem:[%s267] sm:$0xff]
        %v511 = vld [vmem:[%s277] sm:$0xff]
        %513 = vrot.lane.b32.xlu0 %v509, 64
        %v514 = vpop.permute.xlu0 %513
        %516 = vrot.lane.b32.xlu0 %v510, 64
        %v517 = vpop.permute.xlu0 %516
        %v518 = vsel %vm325, %v514, 0
        %v520 = vsel %vm325, %v517, 0
        %522 = vmatpush.xpose.msra.mxu0 0.0
        %523 = vmatpush.xpose.msra.mxu0 0.0
        %524 = vmatpush.xpose.msra.mxu0 0.0
        %525 = vmatpush.xpose.msra.mxu0 0.0
        %526 = vmatpush.xpose.msra.mxu0 0.0
        %527 = vmatpush.xpose.msra.mxu0 0.0
        %528 = vmatpush.xpose.msra.mxu0 0.0
        %529 = vmatpush.xpose.msra.mxu0 0.0
        %530 = vmatpush.xpose.msra.mxu0 0.0
        %531 = vmatpush.xpose.msra.mxu0 0.0
        %532 = vmatpush.xpose.msra.mxu0 0.0
        %533 = vmatpush.xpose.msra.mxu0 0.0
        %534 = vmatpush.xpose.msra.mxu0 0.0
        %535 = vmatpush.xpose.msra.mxu0 0.0
        %536 = vmatpush.xpose.msra.mxu0 0.0
        %537 = vmatpush.xpose.msra.mxu0 %v520
        %538 = vmatmul.f32.gmra.mxu0 %v518
        %v539 = vpop.f32.mrf.mxu0
        %v540 = vadd.f32 0.0, %v539
        %541 = vdwg.mxu0
        %v542 = vld [vmem:[#allocation3] sm:$0xff]
        %v543 = vsel %vm353, %v540, -inf
        %544 = vmax.xlane.f32.xlu0 %v543
        %v545 = vpop.xlane.xlu0 %544
        %v546 = vmax.f32 %v542, %v545
        %v547 = vsub.f32 %v542, %v546
        %v548 = vmul.f32 %v547, 1.442695
        %v549 = vpow.pop %v548
        %551 = vset.pattern.permute.xlu0 2
        %552 = vperm.xlu0 %551, %v546
        %v553 = vpop.permute.xlu0 %552
        %v555 = vsub.f32 %v540, %v553
        %v556 = vmul.f32 %v555, 1.442695
        %v557 = vpow.pop %v556
        %v558 = vld [vmem:[#allocation4] sm:$0xff]
        %v559 = vmul.f32 %v549, %v558
        %v560 = vsel %vm353, %v557, 0.0
        %561 = vadd.xlane.f32.xlu0 %v560
        %v562 = vpop.xlane.xlu0 %561
        %v563 = vadd.f32 %v559, %v562
        %vm564 = vcmask 23568
        %565 = vst.msk [vmem:[#allocation4] sm:$0xff] %vm564, %v563
        %v566 = vld [vmem:[#allocation5] sm:$0xff]
        %568 = vset.pattern.permute.xlu0 2
        %569 = vperm.xlu0 %568, %v549
        %v570 = vpop.permute.xlu0 %569
        %v572 = vmul.f32 %v570, %v566
        %574 = vrot.lane.b32.xlu0 %v511, 64
        %v575 = vpop.permute.xlu0 %574
        %v578 = vsel %vm353, %v557, 0
        %580 = vmatpush.msra.mxu0 0.0
        %581 = vmatpush.msra.mxu0 0.0
        %582 = vmatpush.msra.mxu0 0.0
        %583 = vmatpush.msra.mxu0 0.0
        %584 = vmatpush.msra.mxu0 0.0
        %585 = vmatpush.msra.mxu0 0.0
        %586 = vmatpush.msra.mxu0 0.0
        %587 = vmatpush.msra.mxu0 0.0
        %588 = vmatpush.msra.mxu0 0.0
        %589 = vmatpush.msra.mxu0 0.0
        %590 = vmatpush.msra.mxu0 0.0
        %591 = vmatpush.msra.mxu0 0.0
        %592 = vmatpush.msra.mxu0 0.0
        %593 = vmatpush.msra.mxu0 0.0
        %594 = vmatpush.msra.mxu0 0.0
        %595 = vmatpush.msra.mxu0 %v575
        %596 = vmatmul.f32.gmra.mxu0 %v578
        %v597 = vpop.f32.mrf.mxu0
        %v598 = vadd.f32 0.0, %v597
        %599 = vdwg.mxu0
        %601 = vrot.lane.b32.xlu0 %v598, 64
        %v602 = vpop.permute.xlu0 %601
        %v604 = vadd.f32 %v572, %v602
        %vm605 = vcmask 785920
        %606 = vst.msk [vmem:[#allocation5] sm:$0xff] %vm605, %v604
        %607 = vst.msk [vmem:[#allocation3] sm:$0xff] %vm564, %v546
        %v608 = vld [vmem:[#allocation2] sm:$0xff]
        %v609 = vld [vmem:[%s267] sm:$0xff]
        %v610 = vld [vmem:[%s277] sm:$0xff]
        %612 = vrot.lane.b32.xlu0 %v608, 32
        %v613 = vpop.permute.xlu0 %612
        %615 = vrot.lane.b32.xlu0 %v609, 32
        %v616 = vpop.permute.xlu0 %615
        %v617 = vsel %vm325, %v613, 0
        %v619 = vsel %vm325, %v616, 0
        %621 = vmatpush.xpose.msra.mxu0 0.0
        %622 = vmatpush.xpose.msra.mxu0 0.0
        %623 = vmatpush.xpose.msra.mxu0 0.0
        %624 = vmatpush.xpose.msra.mxu0 0.0
        %625 = vmatpush.xpose.msra.mxu0 0.0
        %626 = vmatpush.xpose.msra.mxu0 0.0
        %627 = vmatpush.xpose.msra.mxu0 0.0
        %628 = vmatpush.xpose.msra.mxu0 0.0
        %629 = vmatpush.xpose.msra.mxu0 0.0
        %630 = vmatpush.xpose.msra.mxu0 0.0
        %631 = vmatpush.xpose.msra.mxu0 0.0
        %632 = vmatpush.xpose.msra.mxu0 0.0
        %633 = vmatpush.xpose.msra.mxu0 0.0
        %634 = vmatpush.xpose.msra.mxu0 0.0
        %635 = vmatpush.xpose.msra.mxu0 0.0
        %636 = vmatpush.xpose.msra.mxu0 %v619
        %637 = vmatmul.f32.gmra.mxu0 %v617
        %v638 = vpop.f32.mrf.mxu0
        %v639 = vadd.f32 0.0, %v638
        %640 = vdwg.mxu0
        %v641 = vld [vmem:[#allocation3] sm:$0xff]
        %v642 = vsel %vm353, %v639, -inf
        %643 = vmax.xlane.f32.xlu0 %v642
        %v644 = vpop.xlane.xlu0 %643
        %v645 = vmax.f32 %v641, %v644
        %v646 = vsub.f32 %v641, %v645
        %v647 = vmul.f32 %v646, 1.442695
        %v648 = vpow.pop %v647
        %650 = vset.pattern.permute.xlu0 3
        %651 = vperm.xlu0 %650, %v645
        %v652 = vpop.permute.xlu0 %651
        %v654 = vsub.f32 %v639, %v652
        %v655 = vmul.f32 %v654, 1.442695
        %v656 = vpow.pop %v655
        %v657 = vld [vmem:[#allocation4] sm:$0xff]
        %v658 = vmul.f32 %v648, %v657
        %v659 = vsel %vm353, %v656, 0.0
        %660 = vadd.xlane.f32.xlu0 %v659
        %v661 = vpop.xlane.xlu0 %660
        %v662 = vadd.f32 %v658, %v661
        %vm663 = vcmask 31768
        %664 = vst.msk [vmem:[#allocation4] sm:$0xff] %vm663, %v662
        %v665 = vld [vmem:[#allocation5] sm:$0xff]
        %667 = vset.pattern.permute.xlu0 3
        %668 = vperm.xlu0 %667, %v648
        %v669 = vpop.permute.xlu0 %668
        %v671 = vmul.f32 %v669, %v665
        %673 = vrot.lane.b32.xlu0 %v610, 32
        %v674 = vpop.permute.xlu0 %673
        %v677 = vsel %vm353, %v656, 0
        %679 = vmatpush.msra.mxu0 0.0
        %680 = vmatpush.msra.mxu0 0.0
        %681 = vmatpush.msra.mxu0 0.0
        %682 = vmatpush.msra.mxu0 0.0
        %683 = vmatpush.msra.mxu0 0.0
        %684 = vmatpush.msra.mxu0 0.0
        %685 = vmatpush.msra.mxu0 0.0
        %686 = vmatpush.msra.mxu0 0.0
        %687 = vmatpush.msra.mxu0 0.0
        %688 = vmatpush.msra.mxu0 0.0
        %689 = vmatpush.msra.mxu0 0.0
        %690 = vmatpush.msra.mxu0 0.0
        %691 = vmatpush.msra.mxu0 0.0
        %692 = vmatpush.msra.mxu0 0.0
        %693 = vmatpush.msra.mxu0 0.0
        %694 = vmatpush.msra.mxu0 %v674
        %695 = vmatmul.f32.gmra.mxu0 %v677
        %v696 = vpop.f32.mrf.mxu0
        %v697 = vadd.f32 0.0, %v696
        %698 = vdwg.mxu0
        %700 = vrot.lane.b32.xlu0 %v697, 96
        %v701 = vpop.permute.xlu0 %700
        %v703 = vadd.f32 %v671, %v701
        %vm704 = vcmask 1048320
        %705 = vst.msk [vmem:[#allocation5] sm:$0xff] %vm704, %v703
        %706 = vst.msk [vmem:[#allocation3] sm:$0xff] %vm663, %v645
        // Predicated region
        $region49: #{tpu_custom_call.1} parent=31 // pred_check
          %p707 = pneg %p311
        $region50: #{tpu_custom_call.1} parent=31 // pred_check_branch
          %709 = sbr.rel (%p707) target = $region52
        $region51: #{tpu_custom_call.1} parent=31 // pred_region
          %v710 = vld [vmem:[#allocation4] sm:$0xff]
          %v711 = vrcp.pop %v710
          %v712 = vld [vmem:[#allocation5] sm:$0xff]
          %714 = vset.pattern.permute.xlu0 0
          %715 = vperm.xlu0 %714, %v711
          %v716 = vpop.permute.xlu0 %715
          %v718 = vmul.f32 %v712, %v716
          %719 = vst.msk [vmem:[%s310] sm:$0xff] %vm325, %v718
          %v720 = vld [vmem:[#allocation5] sm:$0xff]
          %721 = vset.pattern.permute.xlu0 1
          %722 = vperm.xlu0 %721, %v711
          %v723 = vpop.permute.xlu0 %722
          %v725 = vmul.f32 %v720, %v723
          %726 = vst.msk [vmem:[%s310] sm:$0xff] %vm506, %v725
          %v727 = vld [vmem:[#allocation5] sm:$0xff]
          %728 = vset.pattern.permute.xlu0 2
          %729 = vperm.xlu0 %728, %v711
          %v730 = vpop.permute.xlu0 %729
          %v732 = vmul.f32 %v727, %v730
          %733 = vst.msk [vmem:[%s310] sm:$0xff] %vm605, %v732
          %v734 = vld [vmem:[#allocation5] sm:$0xff]
          %735 = vset.pattern.permute.xlu0 3
          %736 = vperm.xlu0 %735, %v711
          %v737 = vpop.permute.xlu0 %736
          %v739 = vmul.f32 %v734, %v737
          %740 = vst.msk [vmem:[%s310] sm:$0xff] %vm704, %v739
        $region52: #{tpu_custom_call.1} parent=31 // pred_fallthru
          _
        %s741 = sand.u32 %s151, 1
        %s742 = scalar_lea.sflag [#allocation8], %s741
        %s743 = sand.u32 %s151, 1
        %s744 = smul.addr %s743, 8
        %s745 = scalar_lea.vmem [#allocation12], %s744
        // Predicated region
        $region53: #{tpu_custom_call.1} parent=31 // pred_check
          %p746 = pneg %p161
        $region54: #{tpu_custom_call.1} parent=31 // pred_check_branch
          %748 = sbr.rel (%p746) target = $region56
        $region55: #{tpu_custom_call.1} parent=31 // pred_region
          %750 = vsyncadd %s742, 0
          %s751 = sadd.s32 %s30, %s31
          %s752 = sadd.s32 %s751, %s29
          %s753 = smul.addr %s752, 8
          %s754 = scalar_lea.hbm %s3, %s753
          %s756 = sshll.u32 %s745, 4
          %s757 = int_to_ptr.vmem [resolvable:$true] %s756
          %s758 = sshll.u32 %s754, 4
          %s759 = int_to_ptr.hbm [resolvable:$true] %s758
          %761 = dma.vmem_to_hbm [thread:$0]  %s757, 128, %s759, %s742
        $region56: #{tpu_custom_call.1} parent=31 // pred_fallthru
          _
      $region32: #{tpu_custom_call.1} parent=5 // pred_fallthru
        _
      %p762 = scmp.le.s32.totalorder 2, %s18
      // Predicated region
      $region57: #{tpu_custom_call.1} parent=5 // pred_check
        %p763 = pneg %p762
      $region58: #{tpu_custom_call.1} parent=5 // pred_check_branch
        %765 = sbr.rel (%p763) target = $region60
      $region59: #{tpu_custom_call.1} parent=5 // pred_region
        %s766 = ssub.s32 %s18, 2
        // Predicated region
        $region61: #{tpu_custom_call.1} parent=59 // pred_check
          %p767 = pneg %p167
        $region62: #{tpu_custom_call.1} parent=59 // pred_check_branch
          %769 = sbr.rel (%p767) target = $region64
        $region63: #{tpu_custom_call.1} parent=59 // pred_region
          %s770 = sand.u32 %s152, 1
          %s771 = scalar_lea.sflag [#allocation8], %s770
          %s772 = sand.u32 %s152, 1
          %s773 = smul.addr %s772, 8
          %s774 = scalar_lea.vmem [#allocation12], %s773
          %776 = dma.done %s771, 128
        $region64: #{tpu_custom_call.1} parent=59 // pred_fallthru
          _
      $region60: #{tpu_custom_call.1} parent=5 // pred_fallthru
        _
    $region6: #{tpu_custom_call.1} parent=1 // loop_footer
      %s22 = sadd.s32 1, %s18
    $region7: #{tpu_custom_call.1} parent=1 // loop_footer_branch
      %17 = sbr.rel target = $region3
    $region8: #{tpu_custom_call.1} parent=1 // loop_exit
      _
    %777 = vsyncpa [#allocation7], 1
    %s778 = scalar_lea.sflag [#allocation7], 1
    %779 = vsyncpa %s778, 1
    %780 = vsyncpa [#allocation10], 1
    %s781 = scalar_lea.sflag [#allocation10], 1
    %782 = vsyncpa %s781, 1
    %783 = vsyncpa [#allocation8], 1
    %s784 = scalar_lea.sflag [#allocation8], 1
    %785 = vsyncpa %s784, 1

</llo_original>
